<compile_context>
chip_gen: v7x
topology: tpu7x:2x2x1
jax: 0.10.0
libtpu: 0.0.40
codegen_flags: <defaults>
</compile_context>

<pallas_src>
import jax
import jax.numpy as jnp
from jax.experimental import pallas as pl
from jax.experimental.pallas import tpu as pltpu


def mf_kernel(ids_ref, tab_ref, o_ref):
    # ids_ref : (1, 2, TB) int32  -- row 0: user ids, row 1: num_users + item ids
    # tab_ref : (2F, NU+NI) f32   -- block-diag [[U^T, 0], [0, I^T]], VMEM resident
    # o_ref   : (1, 1, TB) f32    -- lane-dense output tile
    two_f, n_tot = tab_ref.shape
    f = two_f // 2
    tb = o_ref.shape[-1]

    ids = ids_ref[0]                 # (2, TB) int32
    uids = ids[0:1, :]               # (1, TB)  user ids
    iids = ids[1:2, :]               # (1, TB)  item ids, already offset by NU

    # Combined one-hot gather on the MXU: one matmul for both tables.
    # Each column has exactly two ones (one in the user block, one in the item
    # block); the block-diagonal LHS keeps the two gathers independent.
    iota = jax.lax.broadcasted_iota(jnp.int32, (n_tot, tb), 0)
    onehot = jnp.logical_or(iota == uids, iota == iids).astype(jnp.float32)  # (N, TB)

    # Precision.HIGHEST keeps the gather exact in f32 (required for the 1e-4
    # tolerance); fusing the two gathers already halves its MXU cost.
    emb = jnp.dot(tab_ref[...], onehot,
                  preferred_element_type=jnp.float32,
                  precision=jax.lax.Precision.HIGHEST)   # (2F, TB)

    # Dot product: VPU multiply + sublane (XLU) reduce -> lane-dense (1, TB).
    dot = jnp.sum(emb[:f, :] * emb[f:, :], axis=0, keepdims=True)

    o_ref[0] = jax.nn.sigmoid(dot) * 4.0 + 1.0           # EUP + VPU


def prepare_mf_tables(user_table, item_table):
    """One-time setup (hoisted out of the forward path): build the fused
    block-diagonal gather LHS [[U^T, 0], [0, I^T]] of shape (2F, NU+NI)."""
    nu, f = user_table.shape
    ni, f2 = item_table.shape
    assert f == f2
    fused = jnp.zeros((2 * f, nu + ni), jnp.float32)
    fused = fused.at[:f, :nu].set(user_table.T.astype(jnp.float32))
    fused = fused.at[f:, nu:].set(item_table.T.astype(jnp.float32))
    return fused


def mf_forward(user_ids, item_ids, fused_table, num_users, *, tb=None):
    """Pallas MF forward.

    user_ids, item_ids : int (B,)
    fused_table        : f32 (2F, NU+NI)  -- from prepare_mf_tables (setup-time)
    num_users          : int, NU (for item-id offset into the fused table)
    returns            : f32 (B,)
    """
    B = user_ids.shape[0]
    two_f, n_tot = fused_table.shape

    # Gate the one-hot gather path to small, VMEM-resident tables.
    # TODO(synk): HBM row-gather path (scalar-prefetch ids + double-buffered
    # pltpu.make_async_copy) for n_tot > ~4096.
    assert n_tot <= 4096, "one-hot gather path only for small embedding tables"

    if tb is None:
        # Lane-dense tile, capped so the per-tile one-hot stays small and two
        # tiles remain available for v7x megacore sharding at larger B.
        tb = min(512, ((B + 127) // 128) * 128)
    num_tiles = pl.cdiv(B, tb)
    bp = num_tiles * tb

    uids = jnp.pad(user_ids.astype(jnp.int32), (0, bp - B))              # pad id 0
    iids = jnp.pad(item_ids.astype(jnp.int32), (0, bp - B)) + num_users  # offset into item block
    ids = jnp.stack([uids, iids], axis=0)                                # (2, BP)
    ids = ids.reshape(2, num_tiles, tb).transpose(1, 0, 2)               # (T, 2, TB)

    grid_spec = pltpu.PrefetchScalarGridSpec(
        num_scalar_prefetch=0,
        grid=(num_tiles,),
        in_specs=[
            pl.BlockSpec((1, 2, tb), lambda t: (t, 0, 0)),
            # Resident across the grid (constant block index -> DMA'd once).
            # TODO(synk): verify via lower_as_mlir that this constant-index
            # block is not double-buffered; if it is, stage it via a manual
            # DMA into VMEM scratch instead.
            pl.BlockSpec((two_f, n_tot), lambda t: (0, 0)),
        ],
        out_specs=pl.BlockSpec((1, 1, tb), lambda t: (t, 0, 0)),
    )

    # Explicit VMEM budget: resident fused table + per-tile one-hot + gathered
    # embeddings + small id/output buffers (with generous headroom).
    vmem_bytes = 4 * (2 * two_f * n_tot + n_tot * tb + 2 * two_f * tb + 16 * tb)
    vmem_limit = int(min(max(2 * vmem_bytes, 16 * 1024 * 1024), 64 * 1024 * 1024))

    out = pl.pallas_call(
        mf_kernel,
        out_shape=jax.ShapeDtypeStruct((num_tiles, 1, tb), jnp.float32),
        grid_spec=grid_spec,
        compiler_params=pltpu.CompilerParams(
            dimension_semantics=("parallel",),
            vmem_limit_bytes=vmem_limit,
        ),
    )(ids, fused_table)

    return out.reshape(bp)[:B]  # (B,)


def mf_reference(user_ids, item_ids, user_table, item_table):
    ue = user_table[user_ids]
    ie = item_table[item_ids]
    dot = jnp.sum(ue * ie, axis=1)
    return jax.nn.sigmoid(dot) * 4.0 + 1.0


if __name__ == "__main__":
    num_users, num_items, factors = 16, 24, 32
    batch = 8

    key = jax.random.PRNGKey(0)
    k_u, k_i, k_uid, k_iid = jax.random.split(key, 4)

    # nn.Embedding default init: weights ~ N(0, 1)
    user_table = jax.random.normal(k_u, (num_users, factors), dtype=jnp.float32)
    item_table = jax.random.normal(k_i, (num_items, factors), dtype=jnp.float32)

    user_ids = jax.random.randint(k_uid, (batch,), 0, num_users, dtype=jnp.int32)
    item_ids = jax.random.randint(k_iid, (batch,), 0, num_items, dtype=jnp.int32)

    # Setup-time table prep (hoisted out of the per-call forward path).
    fused_table = prepare_mf_tables(user_table, item_table)

    out = mf_forward(user_ids, item_ids, fused_table, num_users)
    out = jax.block_until_ready(out)

    ref = mf_reference(user_ids, item_ids, user_table, item_table)
    assert out.shape == (batch,)
    assert jnp.allclose(out, ref, atol=1e-4, rtol=1e-4), (out, ref)

    print("KERNEL_OK")
</pallas_src>

<mosaic_0001>
module attributes {stable_mosaic.version = 11 : i64} {
  func.func @mf_kernel(%arg0: i32, %arg1: memref<1x2x128xi32, #tpu.memory_space<vmem>>, %arg2: memref<64x40xf32, #tpu.memory_space<vmem>>, %arg3: memref<1x1x128xf32, #tpu.memory_space<vmem>>) attributes {dimension_semantics = [#tpu.dimension_semantics<parallel>], iteration_bounds = array<i64: 1>, scalar_prefetch = 0 : i64, scratch_operands = 0 : i64, tpu.core_type = #tpu.core_type<tc>, window_params = [{transform_indices = @transform_0, window_bounds = array<i64: 1, 2, 128>}, {pipeline_mode = #tpu.pipeline_mode<synchronous>, transform_indices = @transform_1, window_bounds = array<i64: 64, 40>}, {transform_indices = @transform_2, window_bounds = array<i64: 1, 1, 128>}]} {
    %c0 = arith.constant 0 : index
    %c0_0 = arith.constant 0 : index
    %c0_1 = arith.constant 0 : index
    %0 = vector.load %arg1[%c0, %c0_0, %c0_1] : memref<1x2x128xi32, #tpu.memory_space<vmem>>, vector<1x2x128xi32>
    %1 = vector.shape_cast %0 : vector<1x2x128xi32> to vector<2x128xi32>
    %2 = vector.extract_strided_slice %1 {offsets = [0, 0], sizes = [1, 128], strides = [1, 1]} : vector<2x128xi32> to vector<1x128xi32>
    %3 = vector.extract_strided_slice %1 {offsets = [1, 0], sizes = [1, 128], strides = [1, 1]} : vector<2x128xi32> to vector<1x128xi32>
    %4 = tpu.iota {dimensions = array<i32: 0>} : vector<40x128xi32>
    %5 = vector.broadcast %2 : vector<1x128xi32> to vector<40x128xi32>
    %6 = arith.cmpi eq, %4, %5 : vector<40x128xi32>
    %7 = vector.broadcast %3 : vector<1x128xi32> to vector<40x128xi32>
    %8 = arith.cmpi eq, %4, %7 : vector<40x128xi32>
    %9 = arith.ori %6, %8 : vector<40x128xi1>
    %10 = arith.extui %9 : vector<40x128xi1> to vector<40x128xi32>
    %11 = arith.sitofp %10 : vector<40x128xi32> to vector<40x128xf32>
    %c0_2 = arith.constant 0 : index
    %c0_3 = arith.constant 0 : index
    %12 = vector.load %arg2[%c0_2, %c0_3] : memref<64x40xf32, #tpu.memory_space<vmem>>, vector<64x40xf32>
    %cst = arith.constant dense<0.000000e+00> : vector<64x128xf32>
    %13 = tpu.matmul %12, %11, %cst {dimension_numbers = #tpu.dot_dimension_numbers<[1], [0], [0], [1], [0, 0, 1, 1], [], []>, precision = #tpu.contract_precision<fp32>} : vector<64x40xf32>, vector<40x128xf32>, vector<64x128xf32> -> vector<64x128xf32>
    %14 = vector.extract_strided_slice %13 {offsets = [0, 0], sizes = [32, 128], strides = [1, 1]} : vector<64x128xf32> to vector<32x128xf32>
    %15 = vector.extract_strided_slice %13 {offsets = [32, 0], sizes = [32, 128], strides = [1, 1]} : vector<64x128xf32> to vector<32x128xf32>
    %16 = arith.mulf %14, %15 : vector<32x128xf32>
    %cst_4 = arith.constant dense<0.000000e+00> : vector<128xf32>
    %17 = vector.multi_reduction <add>, %16, %cst_4 [0] : vector<32x128xf32> to vector<128xf32>
    %18 = vector.shape_cast %17 : vector<128xf32> to vector<1x128xf32>
    %19 = arith.negf %18 : vector<1x128xf32>
    %20 = math.exp %19 : vector<1x128xf32>
    %cst_5 = arith.constant 1.000000e+00 : f32
    %21 = vector.broadcast %cst_5 : f32 to vector<1x128xf32>
    %22 = arith.addf %21, %20 : vector<1x128xf32>
    %23 = arith.divf %21, %22 : vector<1x128xf32>
    %cst_6 = arith.constant 4.000000e+00 : f32
    %24 = vector.broadcast %cst_6 : f32 to vector<1x128xf32>
    %25 = arith.mulf %23, %24 : vector<1x128xf32>
    %cst_7 = arith.constant 1.000000e+00 : f32
    %26 = vector.broadcast %cst_7 : f32 to vector<1x128xf32>
    %27 = arith.addf %25, %26 : vector<1x128xf32>
    %c0_8 = arith.constant 0 : index
    %c0_9 = arith.constant 0 : index
    %c0_10 = arith.constant 0 : index
    %28 = vector.load %arg3[%c0_8, %c0_9, %c0_10] : memref<1x1x128xf32, #tpu.memory_space<vmem>>, vector<1x1x128xf32>
    %29 = vector.shape_cast %28 : vector<1x1x128xf32> to vector<1x128xf32>
    %30 = vector.shape_cast %27 : vector<1x128xf32> to vector<1x1x128xf32>
    tpu.vector_store %arg3[%c0_8, %c0_9, %c0_10], %30 {strides = array<i32>} : memref<1x1x128xf32, #tpu.memory_space<vmem>>, vector<1x1x128xf32>,
    return
  }
  func.func @transform_0(%arg0: i32) -> (i32, i32, i32) {
    %c0_i32 = arith.constant 0 : i32
    %c0_i32_0 = arith.constant 0 : i32
    %c0_i32_1 = arith.constant 0 : i32
    return %arg0, %c0_i32, %c0_i32_0 : i32, i32, i32
  }
  func.func @transform_1(%arg0: i32) -> (i32, i32) {
    %c0_i32 = arith.constant 0 : i32
    %c0_i32_0 = arith.constant 0 : i32
    %c0_i32_1 = arith.constant 0 : i32
    return %c0_i32, %c0_i32_0 : i32, i32
  }
  func.func @transform_2(%arg0: i32) -> (i32, i32, i32) {
    %c0_i32 = arith.constant 0 : i32
    %c0_i32_0 = arith.constant 0 : i32
    %c0_i32_1 = arith.constant 0 : i32
    return %arg0, %c0_i32, %c0_i32_0 : i32, i32, i32
  }
}

</mosaic_0001>

<llo_original>
// kernel: tpu_custom_call.1
$region0: #{tpu_custom_call.1}
  #allocation0 [shape = 'u32[]', space=smem, size = 0x4, offset = 0x4, fixed_abs, tag = 'smem constant byte address 0x4 - core index']
  #allocation1 [shape = 'u32[144,128]{1,0:T(1,128)}', space=vmem, size = 0x12000, scoped, tag = 'internal scratch']
  %s0 = inlined_call_operand.vmem [shape: s32[1,2,128], index: 0, kind: input, shape index: {}]
  %s1 = inlined_call_operand.vmem [shape: f32[64,40], index: 1, kind: input, shape index: {}]
  %s2 = inlined_call_operand.hbm [shape: f32[1,1,128], index: 2, kind: output, shape index: {}]
  %s3 = sld [smem:[#allocation0]]
  $region18: #{tpu_custom_call.1} parent=0
    _
  %s5 = ssub.s32 1, %s3
  %s6 = scalar_select 0, %s5, %s3
  $region1: #{tpu_custom_call.1} parent=0
    #allocation2 [shape = 'u8[512]{0}', space=vmem, size = 0x400, scoped, tag = 'output window, operand 0, single buffered']
    #allocation3 [shape = 's32[1]{0}', space=sflag, size = 0x4, scoped, tag = 'scoped memory for tpu_custom_call.1']
    %7 = vsyncpa [#allocation3], 0
    // Predicated region
    $region2: #{tpu_custom_call.1} parent=1 // pred_check
      _
    $region3: #{tpu_custom_call.1} parent=1 // pred_check_branch
      %9 = sbr.rel (0) target = $region5
    $region4: #{tpu_custom_call.1} parent=1 // pred_region
      _
    $region5: #{tpu_custom_call.1} parent=1 // pred_fallthru
      _
    // Predicated region
    $region6: #{tpu_custom_call.1} parent=1 // pred_check
      _
    $region7: #{tpu_custom_call.1} parent=1 // pred_check_branch
      %11 = sbr.rel (0) target = $region9
    $region8: #{tpu_custom_call.1} parent=1 // pred_region
      _
    $region9: #{tpu_custom_call.1} parent=1 // pred_fallthru
      _
    %v12 = vld [vmem:[%s0] sm:$0x3]
    %v13 = vlaneseq
    %v14 = vshrl.u32 %v13, 7
    %v15 = vadd.s32 %v14, 8
    %v16 = vadd.s32 %v14, 16
    %v17 = vadd.s32 %v14, 24
    %v18 = vadd.s32 %v14, 32
    %v19 = vlaneseq
    %v20 = vshrl.u32 %v19, 7
    %v21 = vsub.s32 0, %v20
    %v22 = vrot.slane %v12, %v21
    %vm23 = vcmp.eq.s32.totalorder %v14, %v22
    %vm24 = vcmp.eq.s32.totalorder %v15, %v22
    %vm25 = vcmp.eq.s32.totalorder %v16, %v22
    %vm26 = vcmp.eq.s32.totalorder %v17, %v22
    %vm27 = vcmp.eq.s32.totalorder %v18, %v22
    %v28 = vlaneseq
    %v29 = vshrl.u32 %v28, 7
    %v30 = vsub.s32 1, %v29
    %v31 = vrot.slane %v12, %v30
    %vm32 = vcmp.eq.s32.totalorder %v14, %v31
    %vm33 = vcmp.eq.s32.totalorder %v15, %v31
    %vm34 = vcmp.eq.s32.totalorder %v16, %v31
    %vm35 = vcmp.eq.s32.totalorder %v17, %v31
    %vm36 = vcmp.eq.s32.totalorder %v18, %v31
    %vm37 = vmor %vm23, %vm32
    %vm38 = vmor %vm24, %vm33
    %vm39 = vmor %vm25, %vm34
    %vm40 = vmor %vm26, %vm35
    %vm41 = vmor %vm27, %vm36
    %v42 = vsel %vm37, 1, 0
    %v43 = vsel %vm38, 1, 0
    %v44 = vsel %vm39, 1, 0
    %v45 = vsel %vm40, 1, 0
    %v46 = vsel %vm41, 1, 0
    %v47 = vcvt.s32.f32 %v42
    %v48 = vcvt.s32.f32 %v43
    %v49 = vcvt.s32.f32 %v44
    %v50 = vcvt.s32.f32 %v45
    %v51 = vcvt.s32.f32 %v46
    %v52 = vld [vmem:[%s1] sm:$0xff]
    %v53 = vld [vmem:[%s1 + $0x8] sm:$0xff]
    %v54 = vld [vmem:[%s1 + $0x10] sm:$0xff]
    %v55 = vld [vmem:[%s1 + $0x18] sm:$0xff]
    %v56 = vld [vmem:[%s1 + $0x20] sm:$0xff]
    %v57 = vld [vmem:[%s1 + $0x28] sm:$0xff]
    %v58 = vld [vmem:[%s1 + $0x30] sm:$0xff]
    %v59 = vld [vmem:[%s1 + $0x38] sm:$0xff]
    %vm60 = vcmask 326656
    %v62 = vsel %vm60, %v52, 0
    %v65 = vsel %vm60, %v53, 0
    %v68 = vsel %vm60, %v54, 0
    %v71 = vsel %vm60, %v55, 0
    %v74 = vsel %vm60, %v56, 0
    %v77 = vsel %vm60, %v57, 0
    %v80 = vsel %vm60, %v58, 0
    %v83 = vsel %vm60, %v59, 0
    %85 = vmatprep.subr.mxu0 0.0
    %v86 = vand.u32 %v47, 4294901760
    %87 = vmatpush1.msra.mxu0 %v86
    %88 = vmatprep.subr.mxu0 0.0
    %v89 = vand.u32 %v48, 4294901760
    %90 = vmatpush1.msra.mxu0 %v89
    %91 = vmatprep.subr.mxu0 0.0
    %v92 = vand.u32 %v49, 4294901760
    %93 = vmatpush1.msra.mxu0 %v92
    %94 = vmatprep.subr.mxu0 0.0
    %v95 = vand.u32 %v50, 4294901760
    %96 = vmatpush1.msra.mxu0 %v95
    %97 = vmatprep.subr.mxu0 0.0
    %v98 = vand.u32 %v51, 4294901760
    %99 = vmatpush1.msra.mxu0 %v98
    %100 = vmatprep.subr.mxu0 0.0
    %101 = vmatpush1.msra.mxu0 0.0
    %102 = vmatprep.subr.mxu0 0.0
    %103 = vmatpush1.msra.mxu0 0.0
    %104 = vmatprep.subr.mxu0 0.0
    %105 = vmatpush1.msra.mxu0 0.0
    %106 = vmatprep.subr.mxu0 0.0
    %107 = vmatpush1.msra.mxu0 0.0
    %108 = vmatprep.subr.mxu0 0.0
    %109 = vmatpush1.msra.mxu0 0.0
    %110 = vmatprep.subr.mxu0 0.0
    %111 = vmatpush1.msra.mxu0 0.0
    %112 = vmatprep.subr.mxu0 0.0
    %113 = vmatpush1.msra.mxu0 0.0
    %114 = vmatprep.subr.mxu0 0.0
    %115 = vmatpush1.msra.mxu0 0.0
    %116 = vmatprep.subr.mxu0 0.0
    %117 = vmatpush1.msra.mxu0 0.0
    %118 = vmatprep.subr.mxu0 0.0
    %119 = vmatpush1.msra.mxu0 0.0
    %120 = vmatprep.subr.mxu0 0.0
    %121 = vmatpush1.msra.mxu0 0.0
    %122 = vmatprep.subr.mxu0 0.0
    %123 = vmatpush1.msra.mxu0 0.0
    %124 = vmatprep.subr.mxu0 0.0
    %125 = vmatpush1.msra.mxu0 0.0
    %126 = vmatprep.subr.mxu0 0.0
    %127 = vmatpush1.msra.mxu0 0.0
    %128 = vmatprep.subr.mxu0 0.0
    %129 = vmatpush1.msra.mxu0 0.0
    %130 = vmatprep.subr.mxu0 0.0
    %131 = vmatpush1.msra.mxu0 0.0
    %132 = vmatprep.subr.mxu0 0.0
    %133 = vmatpush1.msra.mxu0 0.0
    %134 = vmatprep.subr.mxu0 0.0
    %135 = vmatpush1.msra.mxu0 0.0
    %136 = vmatprep.subr.mxu0 0.0
    %137 = vmatpush1.msra.mxu0 0.0
    %138 = vmatprep.subr.mxu0 0.0
    %139 = vmatpush1.msra.mxu0 0.0
    %140 = vmatprep.subr.mxu0 0.0
    %141 = vmatpush1.msra.mxu0 0.0
    %142 = vmatprep.subr.mxu0 0.0
    %143 = vmatpush1.msra.mxu0 0.0
    %144 = vmatprep.subr.mxu0 0.0
    %145 = vmatpush1.msra.mxu0 0.0
    %146 = vmatprep.subr.mxu0 0.0
    %147 = vmatpush1.msra.mxu0 0.0
    %148 = vmatprep.subr.mxu0 0.0
    %149 = vmatpush1.msra.mxu0 0.0
    %150 = vmatprep.subr.mxu0 0.0
    %151 = vmatpush1.msra.mxu0 0.0
    %152 = vmatprep.subr.mxu0 0.0
    %153 = vmatpush1.msra.mxu0 0.0
    %154 = vmatprep.mubr.f32.mxu0 0.0
    %v155 = vand.u32 %v62, 4294901760
    %v156 = vsub.f32 %v62, %v155
    %v157 = vand.u32 %v156, 4294901760
    %v158 = vsub.f32 %v156, %v157
    %v159 = vand.u32 %v158, 4294901760
    %160 = vmatmul.mubr.f32.gmra.mrb[0].mxu0 %v159
    %v161 = vpop.f32.mrb[0].mxu0
    %v162 = vadd.f32 0.0, %v161
    %v163 = vpop.f32.mrb[0].mxu0
    %164 = vmatprep.mubr.f32.mxu0 0.0
    %v165 = vand.u32 %v65, 4294901760
    %v166 = vsub.f32 %v65, %v165
    %v167 = vand.u32 %v166, 4294901760
    %v168 = vsub.f32 %v166, %v167
    %v169 = vand.u32 %v168, 4294901760
    %170 = vmatmul.mubr.f32.gmra.mrb[0].mxu0 %v169
    %v171 = vpop.f32.mrb[0].mxu0
    %v172 = vadd.f32 0.0, %v171
    %v173 = vpop.f32.mrb[0].mxu0
    %174 = vmatprep.mubr.f32.mxu0 0.0
    %v175 = vand.u32 %v68, 4294901760
    %v176 = vsub.f32 %v68, %v175
    %v177 = vand.u32 %v176, 4294901760
    %v178 = vsub.f32 %v176, %v177
    %v179 = vand.u32 %v178, 4294901760
    %180 = vmatmul.mubr.f32.gmra.mrb[0].mxu0 %v179
    %v181 = vpop.f32.mrb[0].mxu0
    %v182 = vadd.f32 0.0, %v181
    %v183 = vpop.f32.mrb[0].mxu0
    %184 = vmatprep.mubr.f32.mxu0 0.0
    %v185 = vand.u32 %v71, 4294901760
    %v186 = vsub.f32 %v71, %v185
    %v187 = vand.u32 %v186, 4294901760
    %v188 = vsub.f32 %v186, %v187
    %v189 = vand.u32 %v188, 4294901760
    %190 = vmatmul.mubr.f32.gmra.mrb[0].mxu0 %v189
    %v191 = vpop.f32.mrb[0].mxu0
    %v192 = vadd.f32 0.0, %v191
    %v193 = vpop.f32.mrb[0].mxu0
    %194 = vmatprep.mubr.f32.mxu0 0.0
    %v195 = vand.u32 %v74, 4294901760
    %v196 = vsub.f32 %v74, %v195
    %v197 = vand.u32 %v196, 4294901760
    %v198 = vsub.f32 %v196, %v197
    %v199 = vand.u32 %v198, 4294901760
    %200 = vmatmul.mubr.f32.gmra.mrb[0].mxu0 %v199
    %v201 = vpop.f32.mrb[0].mxu0
    %v202 = vadd.f32 0.0, %v201
    %v203 = vpop.f32.mrb[0].mxu0
    %204 = vmatprep.mubr.f32.mxu0 0.0
    %v205 = vand.u32 %v77, 4294901760
    %v206 = vsub.f32 %v77, %v205
    %v207 = vand.u32 %v206, 4294901760
    %v208 = vsub.f32 %v206, %v207
    %v209 = vand.u32 %v208, 4294901760
    %210 = vmatmul.mubr.f32.gmra.mrb[0].mxu0 %v209
    %v211 = vpop.f32.mrb[0].mxu0
    %v212 = vadd.f32 0.0, %v211
    %v213 = vpop.f32.mrb[0].mxu0
    %214 = vmatprep.mubr.f32.mxu0 0.0
    %v215 = vand.u32 %v80, 4294901760
    %v216 = vsub.f32 %v80, %v215
    %v217 = vand.u32 %v216, 4294901760
    %v218 = vsub.f32 %v216, %v217
    %v219 = vand.u32 %v218, 4294901760
    %220 = vmatmul.mubr.f32.gmra.mrb[0].mxu0 %v219
    %v221 = vpop.f32.mrb[0].mxu0
    %v222 = vadd.f32 0.0, %v221
    %v223 = vpop.f32.mrb[0].mxu0
    %224 = vmatprep.mubr.f32.mxu0 0.0
    %v225 = vand.u32 %v83, 4294901760
    %v226 = vsub.f32 %v83, %v225
    %v227 = vand.u32 %v226, 4294901760
    %v228 = vsub.f32 %v226, %v227
    %v229 = vand.u32 %v228, 4294901760
    %230 = vmatmul.mubr.f32.gmra.mrb[0].mxu0 %v229
    %v231 = vpop.f32.mrb[0].mxu0
    %v232 = vadd.f32 0.0, %v231
    %v233 = vpop.f32.mrb[0].mxu0
    %234 = vdwg.mxu0
    %235 = vmatprep.subr.mxu0 0.0
    %v236 = vand.u32 %v47, 4294901760
    %v237 = vsub.f32 %v47, %v236
    %v238 = vand.u32 %v237, 4294901760
    %v239 = vsub.f32 %v237, %v238
    %v240 = vand.u32 %v239, 4294901760
    %241 = vmatpush1.msra.mxu0 %v240
    %242 = vmatprep.subr.mxu0 0.0
    %v243 = vand.u32 %v48, 4294901760
    %v244 = vsub.f32 %v48, %v243
    %v245 = vand.u32 %v244, 4294901760
    %v246 = vsub.f32 %v244, %v245
    %v247 = vand.u32 %v246, 4294901760
    %248 = vmatpush1.msra.mxu0 %v247
    %249 = vmatprep.subr.mxu0 0.0
    %v250 = vand.u32 %v49, 4294901760
    %v251 = vsub.f32 %v49, %v250
    %v252 = vand.u32 %v251, 4294901760
    %v253 = vsub.f32 %v251, %v252
    %v254 = vand.u32 %v253, 4294901760
    %255 = vmatpush1.msra.mxu0 %v254
    %256 = vmatprep.subr.mxu0 0.0
    %v257 = vand.u32 %v50, 4294901760
    %v258 = vsub.f32 %v50, %v257
    %v259 = vand.u32 %v258, 4294901760
    %v260 = vsub.f32 %v258, %v259
    %v261 = vand.u32 %v260, 4294901760
    %262 = vmatpush1.msra.mxu0 %v261
    %263 = vmatprep.subr.mxu0 0.0
    %v264 = vand.u32 %v51, 4294901760
    %v265 = vsub.f32 %v51, %v264
    %v266 = vand.u32 %v265, 4294901760
    %v267 = vsub.f32 %v265, %v266
    %v268 = vand.u32 %v267, 4294901760
    %269 = vmatpush1.msra.mxu0 %v268
    %270 = vmatprep.subr.mxu0 0.0
    %271 = vmatpush1.msra.mxu0 0.0
    %272 = vmatprep.subr.mxu0 0.0
    %273 = vmatpush1.msra.mxu0 0.0
    %274 = vmatprep.subr.mxu0 0.0
    %275 = vmatpush1.msra.mxu0 0.0
    %276 = vmatprep.subr.mxu0 0.0
    %277 = vmatpush1.msra.mxu0 0.0
    %278 = vmatprep.subr.mxu0 0.0
    %279 = vmatpush1.msra.mxu0 0.0
    %280 = vmatprep.subr.mxu0 0.0
    %281 = vmatpush1.msra.mxu0 0.0
    %282 = vmatprep.subr.mxu0 0.0
    %283 = vmatpush1.msra.mxu0 0.0
    %284 = vmatprep.subr.mxu0 0.0
    %285 = vmatpush1.msra.mxu0 0.0
    %286 = vmatprep.subr.mxu0 0.0
    %287 = vmatpush1.msra.mxu0 0.0
    %288 = vmatprep.subr.mxu0 0.0
    %289 = vmatpush1.msra.mxu0 0.0
    %290 = vmatprep.subr.mxu0 0.0
    %291 = vmatpush1.msra.mxu0 0.0
    %292 = vmatprep.subr.mxu0 0.0
    %293 = vmatpush1.msra.mxu0 0.0
    %294 = vmatprep.subr.mxu0 0.0
    %295 = vmatpush1.msra.mxu0 0.0
    %296 = vmatprep.subr.mxu0 0.0
    %297 = vmatpush1.msra.mxu0 0.0
    %298 = vmatprep.subr.mxu0 0.0
    %299 = vmatpush1.msra.mxu0 0.0
    %300 = vmatprep.subr.mxu0 0.0
    %301 = vmatpush1.msra.mxu0 0.0
    %302 = vmatprep.subr.mxu0 0.0
    %303 = vmatpush1.msra.mxu0 0.0
    %304 = vmatprep.subr.mxu0 0.0
    %305 = vmatpush1.msra.mxu0 0.0
    %306 = vmatprep.subr.mxu0 0.0
    %307 = vmatpush1.msra.mxu0 0.0
    %308 = vmatprep.subr.mxu0 0.0
    %309 = vmatpush1.msra.mxu0 0.0
    %310 = vmatprep.subr.mxu0 0.0
    %311 = vmatpush1.msra.mxu0 0.0
    %312 = vmatprep.subr.mxu0 0.0
    %313 = vmatpush1.msra.mxu0 0.0
    %314 = vmatprep.subr.mxu0 0.0
    %315 = vmatpush1.msra.mxu0 0.0
    %316 = vmatprep.subr.mxu0 0.0
    %317 = vmatpush1.msra.mxu0 0.0
    %318 = vmatprep.subr.mxu0 0.0
    %319 = vmatpush1.msra.mxu0 0.0
    %320 = vmatprep.subr.mxu0 0.0
    %321 = vmatpush1.msra.mxu0 0.0
    %322 = vmatprep.subr.mxu0 0.0
    %323 = vmatpush1.msra.mxu0 0.0
    %324 = vmatprep.mubr.f32.mxu0 0.0
    %v325 = vand.u32 %v62, 4294901760
    %326 = vmatmul.mubr.f32.gmra.mrb[0].mxu0 %v325
    %v327 = vpop.f32.mrb[0].mxu0
    %v328 = vadd.f32 %v162, %v327
    %v329 = vpop.f32.mrb[0].mxu0
    %330 = vmatprep.mubr.f32.mxu0 0.0
    %v331 = vand.u32 %v65, 4294901760
    %332 = vmatmul.mubr.f32.gmra.mrb[0].mxu0 %v331
    %v333 = vpop.f32.mrb[0].mxu0
    %v334 = vadd.f32 %v172, %v333
    %v335 = vpop.f32.mrb[0].mxu0
    %336 = vmatprep.mubr.f32.mxu0 0.0
    %v337 = vand.u32 %v68, 4294901760
    %338 = vmatmul.mubr.f32.gmra.mrb[0].mxu0 %v337
    %v339 = vpop.f32.mrb[0].mxu0
    %v340 = vadd.f32 %v182, %v339
    %v341 = vpop.f32.mrb[0].mxu0
    %342 = vmatprep.mubr.f32.mxu0 0.0
    %v343 = vand.u32 %v71, 4294901760
    %344 = vmatmul.mubr.f32.gmra.mrb[0].mxu0 %v343
    %v345 = vpop.f32.mrb[0].mxu0
    %v346 = vadd.f32 %v192, %v345
    %v347 = vpop.f32.mrb[0].mxu0
    %348 = vmatprep.mubr.f32.mxu0 0.0
    %v349 = vand.u32 %v74, 4294901760
    %350 = vmatmul.mubr.f32.gmra.mrb[0].mxu0 %v349
    %v351 = vpop.f32.mrb[0].mxu0
    %v352 = vadd.f32 %v202, %v351
    %v353 = vpop.f32.mrb[0].mxu0
    %354 = vmatprep.mubr.f32.mxu0 0.0
    %v355 = vand.u32 %v77, 4294901760
    %356 = vmatmul.mubr.f32.gmra.mrb[0].mxu0 %v355
    %v357 = vpop.f32.mrb[0].mxu0
    %v358 = vadd.f32 %v212, %v357
    %v359 = vpop.f32.mrb[0].mxu0
    %360 = vmatprep.mubr.f32.mxu0 0.0
    %v361 = vand.u32 %v80, 4294901760
    %362 = vmatmul.mubr.f32.gmra.mrb[0].mxu0 %v361
    %v363 = vpop.f32.mrb[0].mxu0
    %v364 = vadd.f32 %v222, %v363
    %v365 = vpop.f32.mrb[0].mxu0
    %366 = vmatprep.mubr.f32.mxu0 0.0
    %v367 = vand.u32 %v83, 4294901760
    %368 = vmatmul.mubr.f32.gmra.mrb[0].mxu0 %v367
    %v369 = vpop.f32.mrb[0].mxu0
    %v370 = vadd.f32 %v232, %v369
    %v371 = vpop.f32.mrb[0].mxu0
    %372 = vdwg.mxu0
    %373 = vmatprep.subr.mxu0 0.0
    %v374 = vand.u32 %v47, 4294901760
    %v375 = vsub.f32 %v47, %v374
    %376 = vmatpush1.msra.mxu0 %v375
    %377 = vmatprep.subr.mxu0 0.0
    %v378 = vand.u32 %v48, 4294901760
    %v379 = vsub.f32 %v48, %v378
    %380 = vmatpush1.msra.mxu0 %v379
    %381 = vmatprep.subr.mxu0 0.0
    %v382 = vand.u32 %v49, 4294901760
    %v383 = vsub.f32 %v49, %v382
    %384 = vmatpush1.msra.mxu0 %v383
    %385 = vmatprep.subr.mxu0 0.0
    %v386 = vand.u32 %v50, 4294901760
    %v387 = vsub.f32 %v50, %v386
    %388 = vmatpush1.msra.mxu0 %v387
    %389 = vmatprep.subr.mxu0 0.0
    %v390 = vand.u32 %v51, 4294901760
    %v391 = vsub.f32 %v51, %v390
    %392 = vmatpush1.msra.mxu0 %v391
    %393 = vmatprep.subr.mxu0 0.0
    %394 = vmatpush1.msra.mxu0 0.0
    %395 = vmatprep.subr.mxu0 0.0
    %396 = vmatpush1.msra.mxu0 0.0
    %397 = vmatprep.subr.mxu0 0.0
    %398 = vmatpush1.msra.mxu0 0.0
    %399 = vmatprep.subr.mxu0 0.0
    %400 = vmatpush1.msra.mxu0 0.0
    %401 = vmatprep.subr.mxu0 0.0
    %402 = vmatpush1.msra.mxu0 0.0
    %403 = vmatprep.subr.mxu0 0.0
    %404 = vmatpush1.msra.mxu0 0.0
    %405 = vmatprep.subr.mxu0 0.0
    %406 = vmatpush1.msra.mxu0 0.0
    %407 = vmatprep.subr.mxu0 0.0
    %408 = vmatpush1.msra.mxu0 0.0
    %409 = vmatprep.subr.mxu0 0.0
    %410 = vmatpush1.msra.mxu0 0.0
    %411 = vmatprep.subr.mxu0 0.0
    %412 = vmatpush1.msra.mxu0 0.0
    %413 = vmatprep.subr.mxu0 0.0
    %414 = vmatpush1.msra.mxu0 0.0
    %415 = vmatprep.subr.mxu0 0.0
    %416 = vmatpush1.msra.mxu0 0.0
    %417 = vmatprep.subr.mxu0 0.0
    %418 = vmatpush1.msra.mxu0 0.0
    %419 = vmatprep.subr.mxu0 0.0
    %420 = vmatpush1.msra.mxu0 0.0
    %421 = vmatprep.subr.mxu0 0.0
    %422 = vmatpush1.msra.mxu0 0.0
    %423 = vmatprep.subr.mxu0 0.0
    %424 = vmatpush1.msra.mxu0 0.0
    %425 = vmatprep.subr.mxu0 0.0
    %426 = vmatpush1.msra.mxu0 0.0
    %427 = vmatprep.subr.mxu0 0.0
    %428 = vmatpush1.msra.mxu0 0.0
    %429 = vmatprep.subr.mxu0 0.0
    %430 = vmatpush1.msra.mxu0 0.0
    %431 = vmatprep.subr.mxu0 0.0
    %432 = vmatpush1.msra.mxu0 0.0
    %433 = vmatprep.subr.mxu0 0.0
    %434 = vmatpush1.msra.mxu0 0.0
    %435 = vmatprep.subr.mxu0 0.0
    %436 = vmatpush1.msra.mxu0 0.0
    %437 = vmatprep.subr.mxu0 0.0
    %438 = vmatpush1.msra.mxu0 0.0
    %439 = vmatprep.subr.mxu0 0.0
    %440 = vmatpush1.msra.mxu0 0.0
    %441 = vmatprep.subr.mxu0 0.0
    %442 = vmatpush1.msra.mxu0 0.0
    %443 = vmatprep.subr.mxu0 0.0
    %444 = vmatpush1.msra.mxu0 0.0
    %445 = vmatprep.subr.mxu0 0.0
    %446 = vmatpush1.msra.mxu0 0.0
    %447 = vmatprep.mubr.f32.mxu0 0.0
    %v448 = vand.u32 %v62, 4294901760
    %v449 = vsub.f32 %v62, %v448
    %450 = vmatmul.mubr.f32.gmra.mrb[0].mxu0 %v449
    %v451 = vpop.f32.mrb[0].mxu0
    %v452 = vadd.f32 %v328, %v451
    %v453 = vpop.f32.mrb[0].mxu0
    %454 = vmatprep.mubr.f32.mxu0 0.0
    %v455 = vand.u32 %v65, 4294901760
    %v456 = vsub.f32 %v65, %v455
    %457 = vmatmul.mubr.f32.gmra.mrb[0].mxu0 %v456
    %v458 = vpop.f32.mrb[0].mxu0
    %v459 = vadd.f32 %v334, %v458
    %v460 = vpop.f32.mrb[0].mxu0
    %461 = vmatprep.mubr.f32.mxu0 0.0
    %v462 = vand.u32 %v68, 4294901760
    %v463 = vsub.f32 %v68, %v462
    %464 = vmatmul.mubr.f32.gmra.mrb[0].mxu0 %v463
    %v465 = vpop.f32.mrb[0].mxu0
    %v466 = vadd.f32 %v340, %v465
    %v467 = vpop.f32.mrb[0].mxu0
    %468 = vmatprep.mubr.f32.mxu0 0.0
    %v469 = vand.u32 %v71, 4294901760
    %v470 = vsub.f32 %v71, %v469
    %471 = vmatmul.mubr.f32.gmra.mrb[0].mxu0 %v470
    %v472 = vpop.f32.mrb[0].mxu0
    %v473 = vadd.f32 %v346, %v472
    %v474 = vpop.f32.mrb[0].mxu0
    %475 = vmatprep.mubr.f32.mxu0 0.0
    %v476 = vand.u32 %v74, 4294901760
    %v477 = vsub.f32 %v74, %v476
    %478 = vmatmul.mubr.f32.gmra.mrb[0].mxu0 %v477
    %v479 = vpop.f32.mrb[0].mxu0
    %v480 = vadd.f32 %v352, %v479
    %v481 = vpop.f32.mrb[0].mxu0
    %482 = vmatprep.mubr.f32.mxu0 0.0
    %v483 = vand.u32 %v77, 4294901760
    %v484 = vsub.f32 %v77, %v483
    %485 = vmatmul.mubr.f32.gmra.mrb[0].mxu0 %v484
    %v486 = vpop.f32.mrb[0].mxu0
    %v487 = vadd.f32 %v358, %v486
    %v488 = vpop.f32.mrb[0].mxu0
    %489 = vmatprep.mubr.f32.mxu0 0.0
    %v490 = vand.u32 %v80, 4294901760
    %v491 = vsub.f32 %v80, %v490
    %492 = vmatmul.mubr.f32.gmra.mrb[0].mxu0 %v491
    %v493 = vpop.f32.mrb[0].mxu0
    %v494 = vadd.f32 %v364, %v493
    %v495 = vpop.f32.mrb[0].mxu0
    %496 = vmatprep.mubr.f32.mxu0 0.0
    %v497 = vand.u32 %v83, 4294901760
    %v498 = vsub.f32 %v83, %v497
    %499 = vmatmul.mubr.f32.gmra.mrb[0].mxu0 %v498
    %v500 = vpop.f32.mrb[0].mxu0
    %v501 = vadd.f32 %v370, %v500
    %v502 = vpop.f32.mrb[0].mxu0
    %503 = vdwg.mxu0
    %504 = vmatprep.subr.mxu0 0.0
    %v505 = vand.u32 %v47, 4294901760
    %506 = vmatpush1.msra.mxu0 %v505
    %507 = vmatprep.subr.mxu0 0.0
    %v508 = vand.u32 %v48, 4294901760
    %509 = vmatpush1.msra.mxu0 %v508
    %510 = vmatprep.subr.mxu0 0.0
    %v511 = vand.u32 %v49, 4294901760
    %512 = vmatpush1.msra.mxu0 %v511
    %513 = vmatprep.subr.mxu0 0.0
    %v514 = vand.u32 %v50, 4294901760
    %515 = vmatpush1.msra.mxu0 %v514
    %516 = vmatprep.subr.mxu0 0.0
    %v517 = vand.u32 %v51, 4294901760
    %518 = vmatpush1.msra.mxu0 %v517
    %519 = vmatprep.subr.mxu0 0.0
    %520 = vmatpush1.msra.mxu0 0.0
    %521 = vmatprep.subr.mxu0 0.0
    %522 = vmatpush1.msra.mxu0 0.0
    %523 = vmatprep.subr.mxu0 0.0
    %524 = vmatpush1.msra.mxu0 0.0
    %525 = vmatprep.subr.mxu0 0.0
    %526 = vmatpush1.msra.mxu0 0.0
    %527 = vmatprep.subr.mxu0 0.0
    %528 = vmatpush1.msra.mxu0 0.0
    %529 = vmatprep.subr.mxu0 0.0
    %530 = vmatpush1.msra.mxu0 0.0
    %531 = vmatprep.subr.mxu0 0.0
    %532 = vmatpush1.msra.mxu0 0.0
    %533 = vmatprep.subr.mxu0 0.0
    %534 = vmatpush1.msra.mxu0 0.0
    %535 = vmatprep.subr.mxu0 0.0
    %536 = vmatpush1.msra.mxu0 0.0
    %537 = vmatprep.subr.mxu0 0.0
    %538 = vmatpush1.msra.mxu0 0.0
    %539 = vmatprep.subr.mxu0 0.0
    %540 = vmatpush1.msra.mxu0 0.0
    %541 = vmatprep.subr.mxu0 0.0
    %542 = vmatpush1.msra.mxu0 0.0
    %543 = vmatprep.subr.mxu0 0.0
    %544 = vmatpush1.msra.mxu0 0.0
    %545 = vmatprep.subr.mxu0 0.0
    %546 = vmatpush1.msra.mxu0 0.0
    %547 = vmatprep.subr.mxu0 0.0
    %548 = vmatpush1.msra.mxu0 0.0
    %549 = vmatprep.subr.mxu0 0.0
    %550 = vmatpush1.msra.mxu0 0.0
    %551 = vmatprep.subr.mxu0 0.0
    %552 = vmatpush1.msra.mxu0 0.0
    %553 = vmatprep.subr.mxu0 0.0
    %554 = vmatpush1.msra.mxu0 0.0
    %555 = vmatprep.subr.mxu0 0.0
    %556 = vmatpush1.msra.mxu0 0.0
    %557 = vmatprep.subr.mxu0 0.0
    %558 = vmatpush1.msra.mxu0 0.0
    %559 = vmatprep.subr.mxu0 0.0
    %560 = vmatpush1.msra.mxu0 0.0
    %561 = vmatprep.subr.mxu0 0.0
    %562 = vmatpush1.msra.mxu0 0.0
    %563 = vmatprep.subr.mxu0 0.0
    %564 = vmatpush1.msra.mxu0 0.0
    %565 = vmatprep.subr.mxu0 0.0
    %566 = vmatpush1.msra.mxu0 0.0
    %567 = vmatprep.subr.mxu0 0.0
    %568 = vmatpush1.msra.mxu0 0.0
    %569 = vmatprep.subr.mxu0 0.0
    %570 = vmatpush1.msra.mxu0 0.0
    %571 = vmatprep.subr.mxu0 0.0
    %572 = vmatpush1.msra.mxu0 0.0
    %573 = vmatprep.mubr.f32.mxu0 0.0
    %v574 = vand.u32 %v62, 4294901760
    %v575 = vsub.f32 %v62, %v574
    %v576 = vand.u32 %v575, 4294901760
    %577 = vmatmul.mubr.f32.gmra.mrb[0].mxu0 %v576
    %v578 = vpop.f32.mrb[0].mxu0
    %v579 = vadd.f32 %v452, %v578
    %v580 = vpop.f32.mrb[0].mxu0
    %581 = vmatprep.mubr.f32.mxu0 0.0
    %v582 = vand.u32 %v65, 4294901760
    %v583 = vsub.f32 %v65, %v582
    %v584 = vand.u32 %v583, 4294901760
    %585 = vmatmul.mubr.f32.gmra.mrb[0].mxu0 %v584
    %v586 = vpop.f32.mrb[0].mxu0
    %v587 = vadd.f32 %v459, %v586
    %v588 = vpop.f32.mrb[0].mxu0
    %589 = vmatprep.mubr.f32.mxu0 0.0
    %v590 = vand.u32 %v68, 4294901760
    %v591 = vsub.f32 %v68, %v590
    %v592 = vand.u32 %v591, 4294901760
    %593 = vmatmul.mubr.f32.gmra.mrb[0].mxu0 %v592
    %v594 = vpop.f32.mrb[0].mxu0
    %v595 = vadd.f32 %v466, %v594
    %v596 = vpop.f32.mrb[0].mxu0
    %597 = vmatprep.mubr.f32.mxu0 0.0
    %v598 = vand.u32 %v71, 4294901760
    %v599 = vsub.f32 %v71, %v598
    %v600 = vand.u32 %v599, 4294901760
    %601 = vmatmul.mubr.f32.gmra.mrb[0].mxu0 %v600
    %v602 = vpop.f32.mrb[0].mxu0
    %v603 = vadd.f32 %v473, %v602
    %v604 = vpop.f32.mrb[0].mxu0
    %605 = vmatprep.mubr.f32.mxu0 0.0
    %v606 = vand.u32 %v74, 4294901760
    %v607 = vsub.f32 %v74, %v606
    %v608 = vand.u32 %v607, 4294901760
    %609 = vmatmul.mubr.f32.gmra.mrb[0].mxu0 %v608
    %v610 = vpop.f32.mrb[0].mxu0
    %v611 = vadd.f32 %v480, %v610
    %v612 = vpop.f32.mrb[0].mxu0
    %613 = vmatprep.mubr.f32.mxu0 0.0
    %v614 = vand.u32 %v77, 4294901760
    %v615 = vsub.f32 %v77, %v614
    %v616 = vand.u32 %v615, 4294901760
    %617 = vmatmul.mubr.f32.gmra.mrb[0].mxu0 %v616
    %v618 = vpop.f32.mrb[0].mxu0
    %v619 = vadd.f32 %v487, %v618
    %v620 = vpop.f32.mrb[0].mxu0
    %621 = vmatprep.mubr.f32.mxu0 0.0
    %v622 = vand.u32 %v80, 4294901760
    %v623 = vsub.f32 %v80, %v622
    %v624 = vand.u32 %v623, 4294901760
    %625 = vmatmul.mubr.f32.gmra.mrb[0].mxu0 %v624
    %v626 = vpop.f32.mrb[0].mxu0
    %v627 = vadd.f32 %v494, %v626
    %v628 = vpop.f32.mrb[0].mxu0
    %629 = vmatprep.mubr.f32.mxu0 0.0
    %v630 = vand.u32 %v83, 4294901760
    %v631 = vsub.f32 %v83, %v630
    %v632 = vand.u32 %v631, 4294901760
    %633 = vmatmul.mubr.f32.gmra.mrb[0].mxu0 %v632
    %v634 = vpop.f32.mrb[0].mxu0
    %v635 = vadd.f32 %v501, %v634
    %v636 = vpop.f32.mrb[0].mxu0
    %637 = vdwg.mxu0
    %638 = vmatprep.subr.mxu0 0.0
    %v639 = vand.u32 %v47, 4294901760
    %v640 = vsub.f32 %v47, %v639
    %v641 = vand.u32 %v640, 4294901760
    %642 = vmatpush1.msra.mxu0 %v641
    %643 = vmatprep.subr.mxu0 0.0
    %v644 = vand.u32 %v48, 4294901760
    %v645 = vsub.f32 %v48, %v644
    %v646 = vand.u32 %v645, 4294901760
    %647 = vmatpush1.msra.mxu0 %v646
    %648 = vmatprep.subr.mxu0 0.0
    %v649 = vand.u32 %v49, 4294901760
    %v650 = vsub.f32 %v49, %v649
    %v651 = vand.u32 %v650, 4294901760
    %652 = vmatpush1.msra.mxu0 %v651
    %653 = vmatprep.subr.mxu0 0.0
    %v654 = vand.u32 %v50, 4294901760
    %v655 = vsub.f32 %v50, %v654
    %v656 = vand.u32 %v655, 4294901760
    %657 = vmatpush1.msra.mxu0 %v656
    %658 = vmatprep.subr.mxu0 0.0
    %v659 = vand.u32 %v51, 4294901760
    %v660 = vsub.f32 %v51, %v659
    %v661 = vand.u32 %v660, 4294901760
    %662 = vmatpush1.msra.mxu0 %v661
    %663 = vmatprep.subr.mxu0 0.0
    %664 = vmatpush1.msra.mxu0 0.0
    %665 = vmatprep.subr.mxu0 0.0
    %666 = vmatpush1.msra.mxu0 0.0
    %667 = vmatprep.subr.mxu0 0.0
    %668 = vmatpush1.msra.mxu0 0.0
    %669 = vmatprep.subr.mxu0 0.0
    %670 = vmatpush1.msra.mxu0 0.0
    %671 = vmatprep.subr.mxu0 0.0
    %672 = vmatpush1.msra.mxu0 0.0
    %673 = vmatprep.subr.mxu0 0.0
    %674 = vmatpush1.msra.mxu0 0.0
    %675 = vmatprep.subr.mxu0 0.0
    %676 = vmatpush1.msra.mxu0 0.0
    %677 = vmatprep.subr.mxu0 0.0
    %678 = vmatpush1.msra.mxu0 0.0
    %679 = vmatprep.subr.mxu0 0.0
    %680 = vmatpush1.msra.mxu0 0.0
    %681 = vmatprep.subr.mxu0 0.0
    %682 = vmatpush1.msra.mxu0 0.0
    %683 = vmatprep.subr.mxu0 0.0
    %684 = vmatpush1.msra.mxu0 0.0
    %685 = vmatprep.subr.mxu0 0.0
    %686 = vmatpush1.msra.mxu0 0.0
    %687 = vmatprep.subr.mxu0 0.0
    %688 = vmatpush1.msra.mxu0 0.0
    %689 = vmatprep.subr.mxu0 0.0
    %690 = vmatpush1.msra.mxu0 0.0
    %691 = vmatprep.subr.mxu0 0.0
    %692 = vmatpush1.msra.mxu0 0.0
    %693 = vmatprep.subr.mxu0 0.0
    %694 = vmatpush1.msra.mxu0 0.0
    %695 = vmatprep.subr.mxu0 0.0
    %696 = vmatpush1.msra.mxu0 0.0
    %697 = vmatprep.subr.mxu0 0.0
    %698 = vmatpush1.msra.mxu0 0.0
    %699 = vmatprep.subr.mxu0 0.0
    %700 = vmatpush1.msra.mxu0 0.0
    %701 = vmatprep.subr.mxu0 0.0
    %702 = vmatpush1.msra.mxu0 0.0
    %703 = vmatprep.subr.mxu0 0.0
    %704 = vmatpush1.msra.mxu0 0.0
    %705 = vmatprep.subr.mxu0 0.0
    %706 = vmatpush1.msra.mxu0 0.0
    %707 = vmatprep.subr.mxu0 0.0
    %708 = vmatpush1.msra.mxu0 0.0
    %709 = vmatprep.subr.mxu0 0.0
    %710 = vmatpush1.msra.mxu0 0.0
    %711 = vmatprep.subr.mxu0 0.0
    %712 = vmatpush1.msra.mxu0 0.0
    %713 = vmatprep.subr.mxu0 0.0
    %714 = vmatpush1.msra.mxu0 0.0
    %715 = vmatprep.subr.mxu0 0.0
    %716 = vmatpush1.msra.mxu0 0.0
    %717 = vmatprep.mubr.f32.mxu0 0.0
    %v718 = vand.u32 %v62, 4294901760
    %719 = vmatmul.mubr.f32.gmra.mrb[0].mxu0 %v718
    %v720 = vpop.f32.mrb[0].mxu0
    %v721 = vadd.f32 %v579, %v720
    %v722 = vpop.f32.mrb[0].mxu0
    %723 = vmatprep.mubr.f32.mxu0 0.0
    %v724 = vand.u32 %v65, 4294901760
    %725 = vmatmul.mubr.f32.gmra.mrb[0].mxu0 %v724
    %v726 = vpop.f32.mrb[0].mxu0
    %v727 = vadd.f32 %v587, %v726
    %v728 = vpop.f32.mrb[0].mxu0
    %729 = vmatprep.mubr.f32.mxu0 0.0
    %v730 = vand.u32 %v68, 4294901760
    %731 = vmatmul.mubr.f32.gmra.mrb[0].mxu0 %v730
    %v732 = vpop.f32.mrb[0].mxu0
    %v733 = vadd.f32 %v595, %v732
    %v734 = vpop.f32.mrb[0].mxu0
    %735 = vmatprep.mubr.f32.mxu0 0.0
    %v736 = vand.u32 %v71, 4294901760
    %737 = vmatmul.mubr.f32.gmra.mrb[0].mxu0 %v736
    %v738 = vpop.f32.mrb[0].mxu0
    %v739 = vadd.f32 %v603, %v738
    %v740 = vpop.f32.mrb[0].mxu0
    %741 = vmatprep.mubr.f32.mxu0 0.0
    %v742 = vand.u32 %v74, 4294901760
    %743 = vmatmul.mubr.f32.gmra.mrb[0].mxu0 %v742
    %v744 = vpop.f32.mrb[0].mxu0
    %v745 = vadd.f32 %v611, %v744
    %v746 = vpop.f32.mrb[0].mxu0
    %747 = vmatprep.mubr.f32.mxu0 0.0
    %v748 = vand.u32 %v77, 4294901760
    %749 = vmatmul.mubr.f32.gmra.mrb[0].mxu0 %v748
    %v750 = vpop.f32.mrb[0].mxu0
    %v751 = vadd.f32 %v619, %v750
    %v752 = vpop.f32.mrb[0].mxu0
    %753 = vmatprep.mubr.f32.mxu0 0.0
    %v754 = vand.u32 %v80, 4294901760
    %755 = vmatmul.mubr.f32.gmra.mrb[0].mxu0 %v754
    %v756 = vpop.f32.mrb[0].mxu0
    %v757 = vadd.f32 %v627, %v756
    %v758 = vpop.f32.mrb[0].mxu0
    %759 = vmatprep.mubr.f32.mxu0 0.0
    %v760 = vand.u32 %v83, 4294901760
    %761 = vmatmul.mubr.f32.gmra.mrb[0].mxu0 %v760
    %v762 = vpop.f32.mrb[0].mxu0
    %v763 = vadd.f32 %v635, %v762
    %v764 = vpop.f32.mrb[0].mxu0
    %765 = vdwg.mxu0
    %766 = vmatprep.subr.mxu0 0.0
    %v767 = vand.u32 %v47, 4294901760
    %768 = vmatpush1.msra.mxu0 %v767
    %769 = vmatprep.subr.mxu0 0.0
    %v770 = vand.u32 %v48, 4294901760
    %771 = vmatpush1.msra.mxu0 %v770
    %772 = vmatprep.subr.mxu0 0.0
    %v773 = vand.u32 %v49, 4294901760
    %774 = vmatpush1.msra.mxu0 %v773
    %775 = vmatprep.subr.mxu0 0.0
    %v776 = vand.u32 %v50, 4294901760
    %777 = vmatpush1.msra.mxu0 %v776
    %778 = vmatprep.subr.mxu0 0.0
    %v779 = vand.u32 %v51, 4294901760
    %780 = vmatpush1.msra.mxu0 %v779
    %781 = vmatprep.subr.mxu0 0.0
    %782 = vmatpush1.msra.mxu0 0.0
    %783 = vmatprep.subr.mxu0 0.0
    %784 = vmatpush1.msra.mxu0 0.0
    %785 = vmatprep.subr.mxu0 0.0
    %786 = vmatpush1.msra.mxu0 0.0
    %787 = vmatprep.subr.mxu0 0.0
    %788 = vmatpush1.msra.mxu0 0.0
    %789 = vmatprep.subr.mxu0 0.0
    %790 = vmatpush1.msra.mxu0 0.0
    %791 = vmatprep.subr.mxu0 0.0
    %792 = vmatpush1.msra.mxu0 0.0
    %793 = vmatprep.subr.mxu0 0.0
    %794 = vmatpush1.msra.mxu0 0.0
    %795 = vmatprep.subr.mxu0 0.0
    %796 = vmatpush1.msra.mxu0 0.0
    %797 = vmatprep.subr.mxu0 0.0
    %798 = vmatpush1.msra.mxu0 0.0
    %799 = vmatprep.subr.mxu0 0.0
    %800 = vmatpush1.msra.mxu0 0.0
    %801 = vmatprep.subr.mxu0 0.0
    %802 = vmatpush1.msra.mxu0 0.0
    %803 = vmatprep.subr.mxu0 0.0
    %804 = vmatpush1.msra.mxu0 0.0
    %805 = vmatprep.subr.mxu0 0.0
    %806 = vmatpush1.msra.mxu0 0.0
    %807 = vmatprep.subr.mxu0 0.0
    %808 = vmatpush1.msra.mxu0 0.0
    %809 = vmatprep.subr.mxu0 0.0
    %810 = vmatpush1.msra.mxu0 0.0
    %811 = vmatprep.subr.mxu0 0.0
    %812 = vmatpush1.msra.mxu0 0.0
    %813 = vmatprep.subr.mxu0 0.0
    %814 = vmatpush1.msra.mxu0 0.0
    %815 = vmatprep.subr.mxu0 0.0
    %816 = vmatpush1.msra.mxu0 0.0
    %817 = vmatprep.subr.mxu0 0.0
    %818 = vmatpush1.msra.mxu0 0.0
    %819 = vmatprep.subr.mxu0 0.0
    %820 = vmatpush1.msra.mxu0 0.0
    %821 = vmatprep.subr.mxu0 0.0
    %822 = vmatpush1.msra.mxu0 0.0
    %823 = vmatprep.subr.mxu0 0.0
    %824 = vmatpush1.msra.mxu0 0.0
    %825 = vmatprep.subr.mxu0 0.0
    %826 = vmatpush1.msra.mxu0 0.0
    %827 = vmatprep.subr.mxu0 0.0
    %828 = vmatpush1.msra.mxu0 0.0
    %829 = vmatprep.subr.mxu0 0.0
    %830 = vmatpush1.msra.mxu0 0.0
    %831 = vmatprep.subr.mxu0 0.0
    %832 = vmatpush1.msra.mxu0 0.0
    %833 = vmatprep.subr.mxu0 0.0
    %834 = vmatpush1.msra.mxu0 0.0
    %835 = vmatprep.mubr.f32.mxu0 0.0
    %v836 = vand.u32 %v62, 4294901760
    %837 = vmatmul.mubr.f32.gmra.mrb[0].mxu0 %v836
    %v838 = vpop.f32.mrb[0].mxu0
    %v839 = vadd.f32 %v721, %v838
    %v840 = vpop.f32.mrb[0].mxu0
    %841 = vmatprep.mubr.f32.mxu0 0.0
    %v842 = vand.u32 %v65, 4294901760
    %843 = vmatmul.mubr.f32.gmra.mrb[0].mxu0 %v842
    %v844 = vpop.f32.mrb[0].mxu0
    %v845 = vadd.f32 %v727, %v844
    %v846 = vpop.f32.mrb[0].mxu0
    %847 = vmatprep.mubr.f32.mxu0 0.0
    %v848 = vand.u32 %v68, 4294901760
    %849 = vmatmul.mubr.f32.gmra.mrb[0].mxu0 %v848
    %v850 = vpop.f32.mrb[0].mxu0
    %v851 = vadd.f32 %v733, %v850
    %v852 = vpop.f32.mrb[0].mxu0
    %853 = vmatprep.mubr.f32.mxu0 0.0
    %v854 = vand.u32 %v71, 4294901760
    %855 = vmatmul.mubr.f32.gmra.mrb[0].mxu0 %v854
    %v856 = vpop.f32.mrb[0].mxu0
    %v857 = vadd.f32 %v739, %v856
    %v858 = vpop.f32.mrb[0].mxu0
    %859 = vmatprep.mubr.f32.mxu0 0.0
    %v860 = vand.u32 %v74, 4294901760
    %861 = vmatmul.mubr.f32.gmra.mrb[0].mxu0 %v860
    %v862 = vpop.f32.mrb[0].mxu0
    %v863 = vadd.f32 %v745, %v862
    %v864 = vpop.f32.mrb[0].mxu0
    %865 = vmatprep.mubr.f32.mxu0 0.0
    %v866 = vand.u32 %v77, 4294901760
    %867 = vmatmul.mubr.f32.gmra.mrb[0].mxu0 %v866
    %v868 = vpop.f32.mrb[0].mxu0
    %v869 = vadd.f32 %v751, %v868
    %v870 = vpop.f32.mrb[0].mxu0
    %871 = vmatprep.mubr.f32.mxu0 0.0
    %v872 = vand.u32 %v80, 4294901760
    %873 = vmatmul.mubr.f32.gmra.mrb[0].mxu0 %v872
    %v874 = vpop.f32.mrb[0].mxu0
    %v875 = vadd.f32 %v757, %v874
    %v876 = vpop.f32.mrb[0].mxu0
    %877 = vmatprep.mubr.f32.mxu0 0.0
    %v878 = vand.u32 %v83, 4294901760
    %879 = vmatmul.mubr.f32.gmra.mrb[0].mxu0 %v878
    %v880 = vpop.f32.mrb[0].mxu0
    %v881 = vadd.f32 %v763, %v880
    %v882 = vpop.f32.mrb[0].mxu0
    %883 = vdwg.mxu0
    %v884 = vmul.f32 %v839, %v863
    %v885 = vmul.f32 %v845, %v869
    %v886 = vmul.f32 %v851, %v875
    %v887 = vmul.f32 %v857, %v881
    %v888 = vadd.f32 %v884, %v885
    %v889 = vadd.f32 %v888, %v886
    %v890 = vadd.f32 %v889, %v887
    %v891 = vrot.slane %v890, 4
    %v892 = vadd.f32 %v890, %v891
    %v893 = vrot.slane %v892, 2
    %v894 = vadd.f32 %v892, %v893
    %v895 = vrot.slane %v894, 1
    %v896 = vadd.f32 %v894, %v895
    %v897 = vxor.u32 %v896, 2147483648
    %v898 = vmul.f32 %v897, 1.442695
    %v899 = vpow.pop %v898
    %v900 = vadd.f32 %v899, 1.0
    %v901 = vrcp.pop %v900
    %v902 = vmul.f32 1.0, %v901
    %v903 = vmul.f32 %v902, 4.0
    %v904 = vadd.f32 %v903, 1.0
    %905 = vst [vmem:[#allocation2] sm:$0x1] %v904
    // Predicated region
    $region10: #{tpu_custom_call.1} parent=1 // pred_check
      _
    $region11: #{tpu_custom_call.1} parent=1 // pred_check_branch
      %907 = sbr.rel (0) target = $region13
    $region12: #{tpu_custom_call.1} parent=1 // pred_region
      %s909 = ssub.s32 16, 16
      %910 = vsyncadd [#allocation3], %s909
      %s912 = sshll.u32 [#allocation2], 4
      %s913 = int_to_ptr.vmem [resolvable:$true] %s912
      %915 = dma.vmem_to_hbm [thread:$0]  %s913, 16, %s2, [#allocation3]
    $region13: #{tpu_custom_call.1} parent=1 // pred_fallthru
      _
    // Predicated region
    $region14: #{tpu_custom_call.1} parent=1 // pred_check
      _
    $region15: #{tpu_custom_call.1} parent=1 // pred_check_branch
      %917 = sbr.rel (0) target = $region17
    $region16: #{tpu_custom_call.1} parent=1 // pred_region
      %918 = dma.done [#allocation3], 16
    $region17: #{tpu_custom_call.1} parent=1 // pred_fallthru
      _
    %919 = vsyncpa [#allocation3], 1

</llo_original>
